<compile_context>
chip_gen: v6e
topology: v6e:2x2x1
jax: 0.10.0
libtpu: 0.0.40
codegen_flags: <defaults>
</compile_context>

<pallas_src>
import functools

import jax
import jax.numpy as jnp
import numpy as np
from jax.experimental import pallas as pl
from jax.experimental.pallas import tpu as pltpu


def _attention_kernel(x_ref, w_ref, fcw_ref, fcb_ref, ctx_ref, attn_ref,
                      *, b_blk, enc_T, enc_dim, attn_dim):
    """One batch block: rows = b_blk * enc_T fused feature rows.

    x_ref   : (b_blk*enc_T, K)   K = enc_dim + 3 + dec_dim + 1
    w_ref   : (K, attn_dim)      [V^T ; conv_w ; W^T ; conv_b + b]
    fcw_ref : (1, attn_dim)
    fcb_ref : (1, 1)  (SMEM scalar)
    ctx_ref : (b_blk, enc_dim)
    attn_ref: (b_blk, enc_T)
    """
    # Fused pre-activation: V(values) + Conv1d(last_attn) + W(queries) + (conv_b + b)
    x = x_ref[...]                                                   # (rows, K)
    pre = jnp.dot(x, w_ref[...], preferred_element_type=jnp.float32)  # (rows, attn_dim)
    h = jnp.tanh(pre)

    # fc(.): reduce over attn_dim (lanes) -> one score per (batch, time) row.
    hfc = h * fcw_ref[...]                                           # (rows, attn_dim)
    score = jnp.sum(hfc.reshape(b_blk, enc_T, attn_dim), axis=-1)    # (b_blk, enc_T)
    score = score + fcb_ref[0, 0]

    # softmax over enc_T (lane axis), per batch row.
    m = jnp.max(score, axis=-1, keepdims=True)                       # (b_blk, 1)
    e = jnp.exp(score - m)
    s = jnp.sum(e, axis=-1, keepdims=True)
    attn = e / s                                                     # (b_blk, enc_T)

    # context[b, :] = sum_t attn[b, t] * values[b, t, :]
    # (values re-read as a lane slice of the fused block so the full x value
    #  does not have to stay live across the softmax.)
    vals = x_ref[:, :enc_dim].reshape(b_blk, enc_T, enc_dim)         # (b_blk, enc_T, enc_dim)
    ctx = jnp.sum(attn[:, :, None] * vals, axis=1)                   # (b_blk, enc_dim)

    ctx_ref[...] = ctx.astype(ctx_ref.dtype)
    attn_ref[...] = attn.astype(attn_ref.dtype)


def _round_up(v, m):
    return ((v + m - 1) // m) * m


def attention_forward(queries, values, last_attn, params, *, b_blk_max=64):
    """queries (B,1,dec_dim), values (B,enc_T,enc_dim), last_attn (B,enc_T)."""
    B, _, dec_dim = queries.shape
    _, enc_T, enc_dim = values.shape
    attn_dim = params["W_t"].shape[1]
    f32 = jnp.float32

    queries = queries.astype(f32)
    values = values.astype(f32)
    a = last_attn.astype(f32)

    # ---- fold everything feeding the tanh into one matmul -------------------
    # x[b,t,:] = [ values[b,t,:] | a[b,t-1] | a[b,t] | a[b,t+1] | queries[b,0,:] | 1 ]
    # w_full   = [ V^T ; conv_w ; W^T ; conv_b + b ]
    zero = jnp.zeros((B, 1), f32)
    a_prev = jnp.concatenate([zero, a[:, :-1]], axis=1)
    a_next = jnp.concatenate([a[:, 1:], zero], axis=1)
    a_stack = jnp.stack([a_prev, a, a_next], axis=-1)                  # (B, enc_T, 3)

    q_bcast = jnp.broadcast_to(queries, (B, enc_T, dec_dim))           # (B, enc_T, dec_dim)
    ones = jnp.ones((B, enc_T, 1), f32)
    x = jnp.concatenate([values, a_stack, q_bcast, ones], axis=-1)     # (B, enc_T, K)
    k_all = enc_dim + 3 + dec_dim + 1

    w_full = jnp.concatenate(
        [params["V_t"], params["conv_w"], params["W_t"],
         params["conv_b"] + params["b"]], axis=0).astype(f32)          # (K, attn_dim)
    fcw = params["fc_w"].astype(f32)                                   # (1, attn_dim)
    fcb = params["fc_b"].astype(f32)                                   # (1, 1)

    # ---- batch blocking ------------------------------------------------------
    b_blk = min(b_blk_max, _round_up(B, 8))
    b_pad = _round_up(B, b_blk)
    if b_pad != B:
        x = jnp.pad(x, ((0, b_pad - B), (0, 0), (0, 0)))
    x2d = x.reshape(b_pad * enc_T, k_all)                              # (B_pad*T, K)

    rows_blk = b_blk * enc_T
    grid = (b_pad // b_blk,)

    kernel = functools.partial(
        _attention_kernel, b_blk=b_blk, enc_T=enc_T, enc_dim=enc_dim,
        attn_dim=attn_dim)

    grid_spec = pltpu.PrefetchScalarGridSpec(
        num_scalar_prefetch=0,
        grid=grid,
        in_specs=[
            pl.BlockSpec((rows_blk, k_all), lambda i: (i, 0)),          # fused inputs
            pl.BlockSpec((k_all, attn_dim), lambda i: (0, 0)),          # fused weights
            pl.BlockSpec((1, attn_dim), lambda i: (0, 0)),              # fc weight
            pl.BlockSpec(memory_space=pltpu.MemorySpace.SMEM),          # fc bias scalar
        ],
        out_specs=[
            pl.BlockSpec((b_blk, enc_dim), lambda i: (i, 0)),           # context
            pl.BlockSpec((b_blk, enc_T), lambda i: (i, 0)),             # attention weights
        ],
    )

    ctx2d, attn2d = pl.pallas_call(
        kernel,
        out_shape=(
            jax.ShapeDtypeStruct((b_pad, enc_dim), f32),
            jax.ShapeDtypeStruct((b_pad, enc_T), f32),
        ),
        grid_spec=grid_spec,
        compiler_params=pltpu.CompilerParams(
            dimension_semantics=("parallel",)),
    )(x2d, w_full, fcw, fcb)

    context = ctx2d[:B].reshape(B, 1, enc_dim)
    attn_weight = attn2d[:B]
    return context, attn_weight


def reference_forward(queries, values, last_attn, params):
    """Pure-JAX mirror of the PyTorch forward (smoothing=False, mask=None)."""
    B, enc_T, _ = values.shape
    a = last_attn
    a_prev = jnp.concatenate([jnp.zeros((B, 1), a.dtype), a[:, :-1]], axis=1)
    a_next = jnp.concatenate([a[:, 1:], jnp.zeros((B, 1), a.dtype)], axis=1)
    conv_attn = (a_prev[..., None] * params["conv_w"][0][None, None, :]
                 + a[..., None] * params["conv_w"][1][None, None, :]
                 + a_next[..., None] * params["conv_w"][2][None, None, :]
                 + params["conv_b"][None, :, :])                       # (B, enc_T, attn_dim)
    wq = queries @ params["W_t"]                                       # (B, 1, attn_dim)
    vv = values @ params["V_t"]                                        # (B, enc_T, attn_dim)
    h = jnp.tanh(wq + vv + conv_attn + params["b"][None, :, :])
    score = jnp.sum(h * params["fc_w"][None, :, :], axis=-1) + params["fc_b"][0, 0]
    attn_w = jax.nn.softmax(score, axis=-1)
    ctx = jnp.einsum("bt,btd->bd", attn_w, values)[:, None, :]
    return ctx, attn_w


if __name__ == "__main__":
    B = 2
    dec_dim = 16
    enc_dim = 24
    conv_dim = 8    # unused by the PyTorch forward (kept for signature parity)
    attn_dim = 32
    enc_T = 8

    key = jax.random.PRNGKey(0)
    keys = jax.random.split(key, 10)

    # Deterministic synthetic parameters (shapes follow the nn.Module __init__).
    params = {
        "W_t": jax.random.normal(keys[0], (dec_dim, attn_dim), jnp.float32) * 0.1,   # W.weight^T
        "V_t": jax.random.normal(keys[1], (enc_dim, attn_dim), jnp.float32) * 0.1,   # V.weight^T
        "conv_w": jax.random.normal(keys[2], (3, attn_dim), jnp.float32) * 0.1,      # Conv1d weight (k, out)
        "conv_b": jax.random.normal(keys[3], (1, attn_dim), jnp.float32) * 0.1,      # Conv1d bias
        "b": jax.random.uniform(keys[4], (1, attn_dim), jnp.float32),                # self.b
        "fc_w": jax.random.normal(keys[5], (1, attn_dim), jnp.float32) * 0.1,        # fc.weight
        "fc_b": jax.random.normal(keys[6], (1, 1), jnp.float32) * 0.1,               # fc.bias
    }

    queries = jax.random.normal(keys[7], (B, 1, dec_dim), jnp.float32)
    values = jax.random.normal(keys[8], (B, enc_T, enc_dim), jnp.float32)
    last_attn = jax.nn.softmax(jax.random.normal(keys[9], (B, enc_T), jnp.float32), axis=-1)

    ctx, attn_w = attention_forward(queries, values, last_attn, params)
    jax.block_until_ready((ctx, attn_w))

    ctx_ref, attn_ref = reference_forward(queries, values, last_attn, params)
    np.testing.assert_allclose(np.asarray(ctx), np.asarray(ctx_ref), rtol=1e-4, atol=1e-5)
    np.testing.assert_allclose(np.asarray(attn_w), np.asarray(attn_ref), rtol=1e-4, atol=1e-5)

    print("KERNEL_OK")
</pallas_src>

<mosaic_0001>
module attributes {stable_mosaic.version = 11 : i64} {
  func.func @_attention_kernel(%arg0: i32, %arg1: memref<64x44xf32, #tpu.memory_space<vmem>>, %arg2: memref<44x32xf32, #tpu.memory_space<vmem>>, %arg3: memref<1x32xf32, #tpu.memory_space<vmem>>, %arg4: memref<1x1xf32, #tpu.memory_space<smem>>, %arg5: memref<8x24xf32, #tpu.memory_space<vmem>>, %arg6: memref<8x8xf32, #tpu.memory_space<vmem>>) attributes {dimension_semantics = [#tpu.dimension_semantics<parallel>], iteration_bounds = array<i64: 1>, scalar_prefetch = 0 : i64, scratch_operands = 0 : i64, tpu.core_type = #tpu.core_type<tc>, window_params = [{transform_indices = @transform_0, window_bounds = array<i64: 64, 44>}, {pipeline_mode = #tpu.pipeline_mode<synchronous>, transform_indices = @transform_1, window_bounds = array<i64: 44, 32>}, {pipeline_mode = #tpu.pipeline_mode<synchronous>, transform_indices = @transform_2, window_bounds = array<i64: 1, 32>}, {transform_indices = @transform_3, window_bounds = array<i64: 1, 1>}, {transform_indices = @transform_4, window_bounds = array<i64: 8, 24>}, {transform_indices = @transform_5, window_bounds = array<i64: 8, 8>}]} {
    %c0 = arith.constant 0 : index
    %c0_0 = arith.constant 0 : index
    %0 = vector.load %arg1[%c0, %c0_0] : memref<64x44xf32, #tpu.memory_space<vmem>>, vector<64x44xf32>
    %c0_1 = arith.constant 0 : index
    %c0_2 = arith.constant 0 : index
    %1 = vector.load %arg2[%c0_1, %c0_2] : memref<44x32xf32, #tpu.memory_space<vmem>>, vector<44x32xf32>
    %cst = arith.constant dense<0.000000e+00> : vector<64x32xf32>
    %2 = tpu.matmul %0, %1, %cst {dimension_numbers = #tpu.dot_dimension_numbers<[1], [0], [0], [1], [0, 0, 1, 1], [], []>} : vector<64x44xf32>, vector<44x32xf32>, vector<64x32xf32> -> vector<64x32xf32>
    %3 = math.tanh %2 : vector<64x32xf32>
    %c0_3 = arith.constant 0 : index
    %c0_4 = arith.constant 0 : index
    %4 = vector.load %arg3[%c0_3, %c0_4] : memref<1x32xf32, #tpu.memory_space<vmem>>, vector<1x32xf32>
    %5 = vector.broadcast %4 : vector<1x32xf32> to vector<64x32xf32>
    %6 = arith.mulf %3, %5 : vector<64x32xf32>
    %7 = vector.shape_cast %6 : vector<64x32xf32> to vector<8x8x32xf32>
    %cst_5 = arith.constant dense<0.000000e+00> : vector<8x8xf32>
    %8 = vector.multi_reduction <add>, %7, %cst_5 [2] : vector<8x8x32xf32> to vector<8x8xf32>
    %c0_6 = arith.constant 0 : index
    %c0_7 = arith.constant 0 : index
    %9 = memref.load %arg4[%c0_6, %c0_7] : memref<1x1xf32, #tpu.memory_space<smem>>
    %10 = vector.broadcast %9 : f32 to vector<8x8xf32>
    %11 = arith.addf %8, %10 : vector<8x8xf32>
    %cst_8 = arith.constant dense<0xFF800000> : vector<8xf32>
    %12 = vector.multi_reduction <maximumf>, %11, %cst_8 [1] : vector<8x8xf32> to vector<8xf32>
    %13 = vector.shape_cast %12 : vector<8xf32> to vector<8x1xf32>
    %14 = vector.broadcast %13 : vector<8x1xf32> to vector<8x8xf32>
    %15 = arith.subf %11, %14 : vector<8x8xf32>
    %16 = math.exp %15 : vector<8x8xf32>
    %cst_9 = arith.constant dense<0.000000e+00> : vector<8xf32>
    %17 = vector.multi_reduction <add>, %16, %cst_9 [1] : vector<8x8xf32> to vector<8xf32>
    %18 = vector.shape_cast %17 : vector<8xf32> to vector<8x1xf32>
    %19 = vector.broadcast %18 : vector<8x1xf32> to vector<8x8xf32>
    %20 = arith.divf %16, %19 : vector<8x8xf32>
    %c0_10 = arith.constant 0 : index
    %c0_11 = arith.constant 0 : index
    %21 = vector.load %arg1[%c0_10, %c0_11] : memref<64x44xf32, #tpu.memory_space<vmem>>, vector<64x24xf32>
    %22 = vector.shape_cast %21 : vector<64x24xf32> to vector<8x8x24xf32>
    %23 = vector.shape_cast %20 : vector<8x8xf32> to vector<8x8x1xf32>
    %24 = vector.broadcast %23 : vector<8x8x1xf32> to vector<8x8x24xf32>
    %25 = arith.mulf %24, %22 : vector<8x8x24xf32>
    %cst_12 = arith.constant dense<0.000000e+00> : vector<8x24xf32>
    %26 = vector.multi_reduction <add>, %25, %cst_12 [1] : vector<8x8x24xf32> to vector<8x24xf32>
    %c0_13 = arith.constant 0 : index
    %c0_14 = arith.constant 0 : index
    %27 = vector.load %arg5[%c0_13, %c0_14] : memref<8x24xf32, #tpu.memory_space<vmem>>, vector<8x24xf32>
    tpu.vector_store %arg5[%c0_13, %c0_14], %26 {strides = array<i32>} : memref<8x24xf32, #tpu.memory_space<vmem>>, vector<8x24xf32>,
    %c0_15 = arith.constant 0 : index
    %c0_16 = arith.constant 0 : index
    %28 = vector.load %arg6[%c0_15, %c0_16] : memref<8x8xf32, #tpu.memory_space<vmem>>, vector<8x8xf32>
    tpu.vector_store %arg6[%c0_15, %c0_16], %20 {strides = array<i32>} : memref<8x8xf32, #tpu.memory_space<vmem>>, vector<8x8xf32>,
    return
  }
  func.func @transform_0(%arg0: i32) -> (i32, i32) {
    %c0_i32 = arith.constant 0 : i32
    %c0_i32_0 = arith.constant 0 : i32
    return %arg0, %c0_i32 : i32, i32
  }
  func.func @transform_1(%arg0: i32) -> (i32, i32) {
    %c0_i32 = arith.constant 0 : i32
    %c0_i32_0 = arith.constant 0 : i32
    %c0_i32_1 = arith.constant 0 : i32
    return %c0_i32, %c0_i32_0 : i32, i32
  }
  func.func @transform_2(%arg0: i32) -> (i32, i32) {
    %c0_i32 = arith.constant 0 : i32
    %c0_i32_0 = arith.constant 0 : i32
    %c0_i32_1 = arith.constant 0 : i32
    return %c0_i32, %c0_i32_0 : i32, i32
  }
  func.func @transform_3(%arg0: i32) -> (i32, i32) {
    %c0_i32 = arith.constant 0 : i32
    %c0_i32_0 = arith.constant 0 : i32
    %c0_i32_1 = arith.constant 0 : i32
    return %c0_i32, %c0_i32_0 : i32, i32
  }
  func.func @transform_4(%arg0: i32) -> (i32, i32) {
    %c0_i32 = arith.constant 0 : i32
    %c0_i32_0 = arith.constant 0 : i32
    return %arg0, %c0_i32 : i32, i32
  }
  func.func @transform_5(%arg0: i32) -> (i32, i32) {
    %c0_i32 = arith.constant 0 : i32
    %c0_i32_0 = arith.constant 0 : i32
    return %arg0, %c0_i32 : i32, i32
  }
}

</mosaic_0001>

<llo_original>
// kernel: tpu_custom_call.1
$region0: #{tpu_custom_call.1}
  #allocation0 [shape = 'u32[]', space=smem, size = 0x4, offset = 0x4, fixed_abs, tag = 'smem constant byte address 0x4 - core index']
  #allocation1 [shape = 'u32[144,128]{1,0:T(1,128)}', space=vmem, size = 0x12000, scoped, tag = 'internal scratch']
  #allocation2 [shape = 'f32[1,1]{1,0:T(1,128)S(6)}', space=smem, size = 0x200, scoped, tag = 'scoped memory for tpu_custom_call.1']
  %s0 = inlined_call_operand.vmem [shape: f32[64,44], index: 0, kind: input, shape index: {}]
  %s1 = inlined_call_operand.vmem [shape: f32[44,32], index: 1, kind: input, shape index: {}]
  %s2 = inlined_call_operand.vmem [shape: f32[1,32], index: 2, kind: input, shape index: {}]
  %s3 = inlined_call_operand.<no memory space> [shape: f32[1,1], index: 3, kind: input, shape index: {}]
  %s4 = inlined_call_operand.hbm [shape: f32[8,24], index: 4, kind: output, shape index: {0}]
  %s5 = inlined_call_operand.hbm [shape: f32[8,8], index: 5, kind: output, shape index: {1}]
  %6 = xla_tuple %s4, %s5
  %s7 = sld [smem:[#allocation0]]
  $region34: #{tpu_custom_call.1} parent=0
    _
  %s9 = ssub.s32 1, %s7
  %s10 = scalar_select 0, %s9, %s7
  %11 = sst [smem:[#allocation2]] %s3
  $region1: #{tpu_custom_call.1} parent=0
    #allocation3 [shape = 'u8[4096]{0}', space=vmem, size = 0x1000, scoped, tag = 'output window, operand 0, single buffered']
    #allocation4 [shape = 's32[1]{0}', space=sflag, size = 0x4, scoped, tag = 'scoped memory for tpu_custom_call.1']
    #allocation5 [shape = 'u8[4096]{0}', space=vmem, size = 0x1000, scoped, tag = 'output window, operand 1, single buffered']
    #allocation6 [shape = 's32[1]{0}', space=sflag, size = 0x4, scoped, tag = 'scoped memory for tpu_custom_call.1']
    %12 = vsyncpa [#allocation4], 0
    %13 = vsyncpa [#allocation6], 0
    // Predicated region
    $region2: #{tpu_custom_call.1} parent=1 // pred_check
      _
    $region3: #{tpu_custom_call.1} parent=1 // pred_check_branch
      %15 = sbr.rel (0) target = $region5
    $region4: #{tpu_custom_call.1} parent=1 // pred_region
      _
    $region5: #{tpu_custom_call.1} parent=1 // pred_fallthru
      _
    // Predicated region
    $region6: #{tpu_custom_call.1} parent=1 // pred_check
      _
    $region7: #{tpu_custom_call.1} parent=1 // pred_check_branch
      %17 = sbr.rel (0) target = $region9
    $region8: #{tpu_custom_call.1} parent=1 // pred_region
      _
    $region9: #{tpu_custom_call.1} parent=1 // pred_fallthru
      _
    // Predicated region
    $region10: #{tpu_custom_call.1} parent=1 // pred_check
      _
    $region11: #{tpu_custom_call.1} parent=1 // pred_check_branch
      %19 = sbr.rel (0) target = $region13
    $region12: #{tpu_custom_call.1} parent=1 // pred_region
      _
    $region13: #{tpu_custom_call.1} parent=1 // pred_fallthru
      _
    // Predicated region
    $region14: #{tpu_custom_call.1} parent=1 // pred_check
      _
    $region15: #{tpu_custom_call.1} parent=1 // pred_check_branch
      %21 = sbr.rel (0) target = $region17
    $region16: #{tpu_custom_call.1} parent=1 // pred_region
      _
    $region17: #{tpu_custom_call.1} parent=1 // pred_fallthru
      _
    %v22 = vld [vmem:[%s0] sm:$0xff]
    %v23 = vld [vmem:[%s0 + $0x8] sm:$0xff]
    %v24 = vld [vmem:[%s0 + $0x10] sm:$0xff]
    %v25 = vld [vmem:[%s0 + $0x18] sm:$0xff]
    %v26 = vld [vmem:[%s0 + $0x20] sm:$0xff]
    %v27 = vld [vmem:[%s0 + $0x28] sm:$0xff]
    %v28 = vld [vmem:[%s0 + $0x30] sm:$0xff]
    %v29 = vld [vmem:[%s0 + $0x38] sm:$0xff]
    %v30 = vld [vmem:[%s1] sm:$0xff]
    %v31 = vld [vmem:[%s1 + $0x8] sm:$0xff]
    %v32 = vld [vmem:[%s1 + $0x10] sm:$0xff]
    %v33 = vld [vmem:[%s1 + $0x18] sm:$0xff]
    %v34 = vld [vmem:[%s1 + $0x20] sm:$0xff]
    %v35 = vld [vmem:[%s1 + $0x28] sm:$0xf]
    %vm36 = vcmask 359424
    %v38 = vsel %vm36, %v22, 0
    %v41 = vsel %vm36, %v23, 0
    %v44 = vsel %vm36, %v24, 0
    %v47 = vsel %vm36, %v25, 0
    %v50 = vsel %vm36, %v26, 0
    %v53 = vsel %vm36, %v27, 0
    %v56 = vsel %vm36, %v28, 0
    %v59 = vsel %vm36, %v29, 0
    %vm61 = vcmask 1043456
    %v63 = vsel %vm61, %v35, 0
    %65 = vmatprep.subr.mxu0 0.0
    %66 = vmatpush1.msra.mxu0 0.0
    %67 = vmatprep.subr.mxu0 0.0
    %68 = vmatpush1.msra.mxu0 0.0
    %69 = vmatprep.subr.mxu0 0.0
    %70 = vmatpush1.msra.mxu0 0.0
    %71 = vmatprep.subr.mxu0 0.0
    %72 = vmatpush1.msra.mxu0 0.0
    %73 = vmatprep.subr.mxu0 0.0
    %74 = vmatpush1.msra.mxu0 0.0
    %75 = vmatprep.subr.mxu0 0.0
    %76 = vmatpush1.msra.mxu0 0.0
    %77 = vmatprep.subr.mxu0 0.0
    %78 = vmatpush1.msra.mxu0 0.0
    %79 = vmatprep.subr.mxu0 0.0
    %80 = vmatpush1.msra.mxu0 0.0
    %81 = vmatprep.subr.mxu0 0.0
    %82 = vmatpush1.msra.mxu0 0.0
    %83 = vmatprep.subr.mxu0 0.0
    %84 = vmatpush1.msra.mxu0 0.0
    %85 = vmatprep.subr.mxu0 0.0
    %86 = vmatpush1.msra.mxu0 %v63
    %87 = vmatprep.subr.mxu0 0.0
    %88 = vmatpush1.msra.mxu0 %v34
    %89 = vmatprep.subr.mxu0 0.0
    %90 = vmatpush1.msra.mxu0 %v33
    %91 = vmatprep.subr.mxu0 0.0
    %92 = vmatpush1.msra.mxu0 %v32
    %93 = vmatprep.subr.mxu0 0.0
    %94 = vmatpush1.msra.mxu0 %v31
    %95 = vmatprep.subr.mxu0 0.0
    %96 = vmatpush1.msra.mxu0 %v30
    %97 = vmatprep.subr.mxu0 0.0
    %98 = vmatpush2.msra.mxu0 0.0
    %99 = vmatprep.subr.mxu0 0.0
    %100 = vmatpush2.msra.mxu0 0.0
    %101 = vmatprep.subr.mxu0 0.0
    %102 = vmatpush2.msra.mxu0 0.0
    %103 = vmatprep.subr.mxu0 0.0
    %104 = vmatpush2.msra.mxu0 0.0
    %105 = vmatprep.subr.mxu0 0.0
    %106 = vmatpush2.msra.mxu0 0.0
    %107 = vmatprep.subr.mxu0 0.0
    %108 = vmatpush2.msra.mxu0 0.0
    %109 = vmatprep.subr.mxu0 0.0
    %110 = vmatpush2.msra.mxu0 0.0
    %111 = vmatprep.subr.mxu0 0.0
    %112 = vmatpush2.msra.mxu0 0.0
    %113 = vmatprep.subr.mxu0 0.0
    %114 = vmatpush2.msra.mxu0 0.0
    %115 = vmatprep.subr.mxu0 0.0
    %116 = vmatpush2.msra.mxu0 0.0
    %117 = vmatprep.subr.mxu0 0.0
    %118 = vmatpush2.msra.mxu0 0.0
    %119 = vmatprep.subr.mxu0 0.0
    %120 = vmatpush2.msra.mxu0 0.0
    %121 = vmatprep.subr.mxu0 0.0
    %122 = vmatpush2.msra.mxu0 0.0
    %123 = vmatprep.subr.mxu0 0.0
    %124 = vmatpush2.msra.mxu0 0.0
    %125 = vmatprep.subr.mxu0 0.0
    %126 = vmatpush2.msra.mxu0 0.0
    %127 = vmatprep.subr.mxu0 0.0
    %128 = vmatpush2.msra.mxu0 0.0
    %129 = vmatprep.mubr.f32.mxu0 0.0
    %130 = vmatmul.mubr.f32.gmra.mxu0 %v38
    %v131 = vpop.f32.mrf.mxu0
    %v132 = vadd.f32 0.0, %v131
    %v133 = vpop.f32.mrf.mxu0
    %134 = vmatprep.mubr.f32.mxu0 0.0
    %135 = vmatmul.mubr.f32.gmra.mxu0 %v41
    %v136 = vpop.f32.mrf.mxu0
    %v137 = vadd.f32 0.0, %v136
    %v138 = vpop.f32.mrf.mxu0
    %139 = vmatprep.mubr.f32.mxu0 0.0
    %140 = vmatmul.mubr.f32.gmra.mxu0 %v44
    %v141 = vpop.f32.mrf.mxu0
    %v142 = vadd.f32 0.0, %v141
    %v143 = vpop.f32.mrf.mxu0
    %144 = vmatprep.mubr.f32.mxu0 0.0
    %145 = vmatmul.mubr.f32.gmra.mxu0 %v47
    %v146 = vpop.f32.mrf.mxu0
    %v147 = vadd.f32 0.0, %v146
    %v148 = vpop.f32.mrf.mxu0
    %149 = vmatprep.mubr.f32.mxu0 0.0
    %150 = vmatmul.mubr.f32.gmra.mxu0 %v50
    %v151 = vpop.f32.mrf.mxu0
    %v152 = vadd.f32 0.0, %v151
    %v153 = vpop.f32.mrf.mxu0
    %154 = vmatprep.mubr.f32.mxu0 0.0
    %155 = vmatmul.mubr.f32.gmra.mxu0 %v53
    %v156 = vpop.f32.mrf.mxu0
    %v157 = vadd.f32 0.0, %v156
    %v158 = vpop.f32.mrf.mxu0
    %159 = vmatprep.mubr.f32.mxu0 0.0
    %160 = vmatmul.mubr.f32.gmra.mxu0 %v56
    %v161 = vpop.f32.mrf.mxu0
    %v162 = vadd.f32 0.0, %v161
    %v163 = vpop.f32.mrf.mxu0
    %164 = vmatprep.mubr.f32.mxu0 0.0
    %165 = vmatmul.mubr.f32.gmra.mxu0 %v59
    %v166 = vpop.f32.mrf.mxu0
    %v167 = vadd.f32 0.0, %v166
    %v168 = vpop.f32.mrf.mxu0
    %169 = vdwg.mxu0
    %v170 = vtanh.pop %v132
    %v171 = vtanh.pop %v137
    %v172 = vtanh.pop %v142
    %v173 = vtanh.pop %v147
    %v174 = vtanh.pop %v152
    %v175 = vtanh.pop %v157
    %v176 = vtanh.pop %v162
    %v177 = vtanh.pop %v167
    %v178 = vld [vmem:[%s2] sm:$0x1]
    %v180 = vlaneseq
    %v181 = vshrl.u32 %v180, 7
    %v182 = vsub.s32 0, %v181
    %v183 = vrot.slane %v178, %v182
    %v185 = vmul.f32 %v170, %v183
    %v186 = vmul.f32 %v171, %v183
    %v187 = vmul.f32 %v172, %v183
    %v188 = vmul.f32 %v173, %v183
    %v189 = vmul.f32 %v174, %v183
    %v190 = vmul.f32 %v175, %v183
    %v191 = vmul.f32 %v176, %v183
    %v192 = vmul.f32 %v177, %v183
    %vm193 = vcmask 261120
    %v194 = vsel %vm193, %v185, 0.0
    %195 = vadd.xlane.f32.xlu0 %v194
    %v196 = vpop.xlane.xlu0 %195
    %v197 = vsel %vm193, %v186, 0.0
    %198 = vadd.xlane.f32.xlu0 %v197
    %v199 = vpop.xlane.xlu0 %198
    %v200 = vsel %vm193, %v187, 0.0
    %201 = vadd.xlane.f32.xlu0 %v200
    %v202 = vpop.xlane.xlu0 %201
    %v203 = vsel %vm193, %v188, 0.0
    %204 = vadd.xlane.f32.xlu0 %v203
    %v205 = vpop.xlane.xlu0 %204
    %v206 = vsel %vm193, %v189, 0.0
    %207 = vadd.xlane.f32.xlu0 %v206
    %v208 = vpop.xlane.xlu0 %207
    %v209 = vsel %vm193, %v190, 0.0
    %210 = vadd.xlane.f32.xlu0 %v209
    %v211 = vpop.xlane.xlu0 %210
    %v212 = vsel %vm193, %v191, 0.0
    %213 = vadd.xlane.f32.xlu0 %v212
    %v214 = vpop.xlane.xlu0 %213
    %v215 = vsel %vm193, %v192, 0.0
    %216 = vadd.xlane.f32.xlu0 %v215
    %v217 = vpop.xlane.xlu0 %216
    %s218 = sld [smem:[#allocation2]]
    %v219 = vstv %s218
    %v220 = vadd.f32 %v196, %v219
    %v221 = vadd.f32 %v199, %v219
    %v222 = vadd.f32 %v202, %v219
    %v223 = vadd.f32 %v205, %v219
    %v224 = vadd.f32 %v208, %v219
    %v225 = vadd.f32 %v211, %v219
    %v226 = vadd.f32 %v214, %v219
    %v227 = vadd.f32 %v217, %v219
    %v236 = vlaneseq
    %v237 = vand.u32 %v236, 127
    %v238 = vlaneseq
    %v239 = vshrl.u32 %v238, 7
    %v240 = vsub.s32 %v237, %v239
    %v241 = vrot.slane %v220, %v240
    %v242 = vlaneseq
    %v243 = vshrl.u32 %v242, 7
    %v244 = vsub.s32 %v237, %v243
    %v245 = vrot.slane %v221, %v244
    %v246 = vlaneseq
    %v247 = vshrl.u32 %v246, 7
    %v248 = vsub.s32 %v237, %v247
    %v249 = vrot.slane %v222, %v248
    %v250 = vlaneseq
    %v251 = vshrl.u32 %v250, 7
    %v252 = vsub.s32 %v237, %v251
    %v253 = vrot.slane %v223, %v252
    %v254 = vlaneseq
    %v255 = vshrl.u32 %v254, 7
    %v256 = vsub.s32 %v237, %v255
    %v257 = vrot.slane %v224, %v256
    %v258 = vlaneseq
    %v259 = vshrl.u32 %v258, 7
    %v260 = vsub.s32 %v237, %v259
    %v261 = vrot.slane %v225, %v260
    %v262 = vlaneseq
    %v263 = vshrl.u32 %v262, 7
    %v264 = vsub.s32 %v237, %v263
    %v265 = vrot.slane %v226, %v264
    %v266 = vlaneseq
    %v267 = vshrl.u32 %v266, 7
    %v268 = vsub.s32 %v237, %v267
    %v269 = vrot.slane %v227, %v268
    %vm270 = vcmask 1041409
    %v271 = vsel %vm270, %v245, %v241
    %vm272 = vcmask 1042434
    %v273 = vsel %vm272, %v249, %v271
    %vm274 = vcmask 1043459
    %v275 = vsel %vm274, %v253, %v273
    %vm276 = vcmask 1044484
    %v277 = vsel %vm276, %v257, %v275
    %vm278 = vcmask 1045509
    %v279 = vsel %vm278, %v261, %v277
    %vm280 = vcmask 1046534
    %v281 = vsel %vm280, %v265, %v279
    %vm282 = vcmask 1047559
    %v283 = vsel %vm282, %v269, %v281
    %vm285 = vcmask 64512
    %v286 = vsel %vm285, %v283, -inf
    %287 = vmax.xlane.f32.xlu0 %v286
    %v288 = vpop.xlane.xlu0 %287
    %v290 = vlaneseq
    %v291 = vshrl.u32 %v290, 7
    %v292 = vsub.s32 0, %v291
    %v293 = vrot.slane %v288, %v292
    %v294 = vlaneseq
    %v295 = vshrl.u32 %v294, 7
    %v296 = vsub.s32 1, %v295
    %v297 = vrot.slane %v288, %v296
    %v298 = vlaneseq
    %v299 = vshrl.u32 %v298, 7
    %v300 = vsub.s32 2, %v299
    %v301 = vrot.slane %v288, %v300
    %v302 = vlaneseq
    %v303 = vshrl.u32 %v302, 7
    %v304 = vsub.s32 3, %v303
    %v305 = vrot.slane %v288, %v304
    %v306 = vlaneseq
    %v307 = vshrl.u32 %v306, 7
    %v308 = vsub.s32 4, %v307
    %v309 = vrot.slane %v288, %v308
    %v310 = vlaneseq
    %v311 = vshrl.u32 %v310, 7
    %v312 = vsub.s32 5, %v311
    %v313 = vrot.slane %v288, %v312
    %v314 = vlaneseq
    %v315 = vshrl.u32 %v314, 7
    %v316 = vsub.s32 6, %v315
    %v317 = vrot.slane %v288, %v316
    %v318 = vlaneseq
    %v319 = vshrl.u32 %v318, 7
    %v320 = vsub.s32 7, %v319
    %v321 = vrot.slane %v288, %v320
    %v330 = vsub.f32 %v220, %v293
    %v331 = vsub.f32 %v221, %v297
    %v332 = vsub.f32 %v222, %v301
    %v333 = vsub.f32 %v223, %v305
    %v334 = vsub.f32 %v224, %v309
    %v335 = vsub.f32 %v225, %v313
    %v336 = vsub.f32 %v226, %v317
    %v337 = vsub.f32 %v227, %v321
    %v338 = vmul.f32 %v330, 1.442695
    %v339 = vpow.pop %v338
    %v340 = vmul.f32 %v331, 1.442695
    %v341 = vpow.pop %v340
    %v342 = vmul.f32 %v332, 1.442695
    %v343 = vpow.pop %v342
    %v344 = vmul.f32 %v333, 1.442695
    %v345 = vpow.pop %v344
    %v346 = vmul.f32 %v334, 1.442695
    %v347 = vpow.pop %v346
    %v348 = vmul.f32 %v335, 1.442695
    %v349 = vpow.pop %v348
    %v350 = vmul.f32 %v336, 1.442695
    %v351 = vpow.pop %v350
    %v352 = vmul.f32 %v337, 1.442695
    %v353 = vpow.pop %v352
    %362 = vset.pattern.permute.xlu0 0
    %363 = vperm.xlu0 %362, %v339
    %v364 = vpop.permute.xlu0 %363
    %365 = vset.pattern.permute.xlu0 0
    %366 = vperm.xlu0 %365, %v341
    %v367 = vpop.permute.xlu0 %366
    %368 = vset.pattern.permute.xlu0 0
    %369 = vperm.xlu0 %368, %v343
    %v370 = vpop.permute.xlu0 %369
    %371 = vset.pattern.permute.xlu0 0
    %372 = vperm.xlu0 %371, %v345
    %v373 = vpop.permute.xlu0 %372
    %374 = vset.pattern.permute.xlu0 0
    %375 = vperm.xlu0 %374, %v347
    %v376 = vpop.permute.xlu0 %375
    %377 = vset.pattern.permute.xlu0 0
    %378 = vperm.xlu0 %377, %v349
    %v379 = vpop.permute.xlu0 %378
    %380 = vset.pattern.permute.xlu0 0
    %381 = vperm.xlu0 %380, %v351
    %v382 = vpop.permute.xlu0 %381
    %383 = vset.pattern.permute.xlu0 0
    %384 = vperm.xlu0 %383, %v353
    %v385 = vpop.permute.xlu0 %384
    %v386 = vlaneseq
    %v387 = vshrl.u32 %v386, 7
    %v388 = vsub.s32 %v237, %v387
    %v389 = vrot.slane %v364, %v388
    %v390 = vlaneseq
    %v391 = vshrl.u32 %v390, 7
    %v392 = vsub.s32 %v237, %v391
    %v393 = vrot.slane %v367, %v392
    %v394 = vlaneseq
    %v395 = vshrl.u32 %v394, 7
    %v396 = vsub.s32 %v237, %v395
    %v397 = vrot.slane %v370, %v396
    %v398 = vlaneseq
    %v399 = vshrl.u32 %v398, 7
    %v400 = vsub.s32 %v237, %v399
    %v401 = vrot.slane %v373, %v400
    %v402 = vlaneseq
    %v403 = vshrl.u32 %v402, 7
    %v404 = vsub.s32 %v237, %v403
    %v405 = vrot.slane %v376, %v404
    %v406 = vlaneseq
    %v407 = vshrl.u32 %v406, 7
    %v408 = vsub.s32 %v237, %v407
    %v409 = vrot.slane %v379, %v408
    %v410 = vlaneseq
    %v411 = vshrl.u32 %v410, 7
    %v412 = vsub.s32 %v237, %v411
    %v413 = vrot.slane %v382, %v412
    %v414 = vlaneseq
    %v415 = vshrl.u32 %v414, 7
    %v416 = vsub.s32 %v237, %v415
    %v417 = vrot.slane %v385, %v416
    %v418 = vsel %vm270, %v393, %v389
    %v419 = vsel %vm272, %v397, %v418
    %v420 = vsel %vm274, %v401, %v419
    %v421 = vsel %vm276, %v405, %v420
    %v422 = vsel %vm278, %v409, %v421
    %v423 = vsel %vm280, %v413, %v422
    %v424 = vsel %vm282, %v417, %v423
    %v426 = vsel %vm285, %v424, 0.0
    %427 = vadd.xlane.f32.xlu0 %v426
    %v428 = vpop.xlane.xlu0 %427
    %v430 = vlaneseq
    %v431 = vshrl.u32 %v430, 7
    %v432 = vsub.s32 0, %v431
    %v433 = vrot.slane %v428, %v432
    %v434 = vlaneseq
    %v435 = vshrl.u32 %v434, 7
    %v436 = vsub.s32 1, %v435
    %v437 = vrot.slane %v428, %v436
    %v438 = vlaneseq
    %v439 = vshrl.u32 %v438, 7
    %v440 = vsub.s32 2, %v439
    %v441 = vrot.slane %v428, %v440
    %v442 = vlaneseq
    %v443 = vshrl.u32 %v442, 7
    %v444 = vsub.s32 3, %v443
    %v445 = vrot.slane %v428, %v444
    %v446 = vlaneseq
    %v447 = vshrl.u32 %v446, 7
    %v448 = vsub.s32 4, %v447
    %v449 = vrot.slane %v428, %v448
    %v450 = vlaneseq
    %v451 = vshrl.u32 %v450, 7
    %v452 = vsub.s32 5, %v451
    %v453 = vrot.slane %v428, %v452
    %v454 = vlaneseq
    %v455 = vshrl.u32 %v454, 7
    %v456 = vsub.s32 6, %v455
    %v457 = vrot.slane %v428, %v456
    %v458 = vlaneseq
    %v459 = vshrl.u32 %v458, 7
    %v460 = vsub.s32 7, %v459
    %v461 = vrot.slane %v428, %v460
    %v470 = vrcp.pop %v433
    %v471 = vmul.f32 %v339, %v470
    %v472 = vrcp.pop %v437
    %v473 = vmul.f32 %v341, %v472
    %v474 = vrcp.pop %v441
    %v475 = vmul.f32 %v343, %v474
    %v476 = vrcp.pop %v445
    %v477 = vmul.f32 %v345, %v476
    %v478 = vrcp.pop %v449
    %v479 = vmul.f32 %v347, %v478
    %v480 = vrcp.pop %v453
    %v481 = vmul.f32 %v349, %v480
    %v482 = vrcp.pop %v457
    %v483 = vmul.f32 %v351, %v482
    %v484 = vrcp.pop %v461
    %v485 = vmul.f32 %v353, %v484
    %487 = vset.pattern.permute.xlu0 0
    %488 = vperm.xlu0 %487, %v471
    %v489 = vpop.permute.xlu0 %488
    %492 = vset.pattern.permute.xlu0 0
    %493 = vperm.xlu0 %492, %v473
    %v494 = vpop.permute.xlu0 %493
    %497 = vset.pattern.permute.xlu0 0
    %498 = vperm.xlu0 %497, %v475
    %v499 = vpop.permute.xlu0 %498
    %502 = vset.pattern.permute.xlu0 0
    %503 = vperm.xlu0 %502, %v477
    %v504 = vpop.permute.xlu0 %503
    %507 = vset.pattern.permute.xlu0 0
    %508 = vperm.xlu0 %507, %v479
    %v509 = vpop.permute.xlu0 %508
    %512 = vset.pattern.permute.xlu0 0
    %513 = vperm.xlu0 %512, %v481
    %v514 = vpop.permute.xlu0 %513
    %517 = vset.pattern.permute.xlu0 0
    %518 = vperm.xlu0 %517, %v483
    %v519 = vpop.permute.xlu0 %518
    %522 = vset.pattern.permute.xlu0 0
    %523 = vperm.xlu0 %522, %v485
    %v524 = vpop.permute.xlu0 %523
    %v526 = vmul.f32 %v489, %v22
    %v527 = vmul.f32 %v494, %v23
    %v528 = vmul.f32 %v499, %v24
    %v529 = vmul.f32 %v504, %v25
    %v530 = vmul.f32 %v509, %v26
    %v531 = vmul.f32 %v514, %v27
    %v532 = vmul.f32 %v519, %v28
    %v533 = vmul.f32 %v524, %v29
    %vm534 = vcmask 195584
    %v535 = vsel %vm534, %v526, 0.0
    %v536 = vrot.slane %v535, 4
    %v537 = vadd.f32 %v535, %v536
    %v538 = vrot.slane %v537, 2
    %v539 = vadd.f32 %v537, %v538
    %v540 = vrot.slane %v539, 1
    %v541 = vadd.f32 %v539, %v540
    %v542 = vsel %vm534, %v527, 0.0
    %v543 = vrot.slane %v542, 4
    %v544 = vadd.f32 %v542, %v543
    %v545 = vrot.slane %v544, 2
    %v546 = vadd.f32 %v544, %v545
    %v547 = vrot.slane %v546, 1
    %v548 = vadd.f32 %v546, %v547
    %v549 = vsel %vm534, %v528, 0.0
    %v550 = vrot.slane %v549, 4
    %v551 = vadd.f32 %v549, %v550
    %v552 = vrot.slane %v551, 2
    %v553 = vadd.f32 %v551, %v552
    %v554 = vrot.slane %v553, 1
    %v555 = vadd.f32 %v553, %v554
    %v556 = vsel %vm534, %v529, 0.0
    %v557 = vrot.slane %v556, 4
    %v558 = vadd.f32 %v556, %v557
    %v559 = vrot.slane %v558, 2
    %v560 = vadd.f32 %v558, %v559
    %v561 = vrot.slane %v560, 1
    %v562 = vadd.f32 %v560, %v561
    %v563 = vsel %vm534, %v530, 0.0
    %v564 = vrot.slane %v563, 4
    %v565 = vadd.f32 %v563, %v564
    %v566 = vrot.slane %v565, 2
    %v567 = vadd.f32 %v565, %v566
    %v568 = vrot.slane %v567, 1
    %v569 = vadd.f32 %v567, %v568
    %v570 = vsel %vm534, %v531, 0.0
    %v571 = vrot.slane %v570, 4
    %v572 = vadd.f32 %v570, %v571
    %v573 = vrot.slane %v572, 2
    %v574 = vadd.f32 %v572, %v573
    %v575 = vrot.slane %v574, 1
    %v576 = vadd.f32 %v574, %v575
    %v577 = vsel %vm534, %v532, 0.0
    %v578 = vrot.slane %v577, 4
    %v579 = vadd.f32 %v577, %v578
    %v580 = vrot.slane %v579, 2
    %v581 = vadd.f32 %v579, %v580
    %v582 = vrot.slane %v581, 1
    %v583 = vadd.f32 %v581, %v582
    %v584 = vsel %vm534, %v533, 0.0
    %v585 = vrot.slane %v584, 4
    %v586 = vadd.f32 %v584, %v585
    %v587 = vrot.slane %v586, 2
    %v588 = vadd.f32 %v586, %v587
    %v589 = vrot.slane %v588, 1
    %v590 = vadd.f32 %v588, %v589
    %v599 = vsel %vm270, %v548, %v541
    %v600 = vsel %vm272, %v555, %v599
    %v601 = vsel %vm274, %v562, %v600
    %v602 = vsel %vm276, %v569, %v601
    %v603 = vsel %vm278, %v576, %v602
    %v604 = vsel %vm280, %v583, %v603
    %v605 = vsel %vm282, %v590, %v604
    %607 = vst.msk [vmem:[#allocation3] sm:$0xff] %vm534, %v605
    %v608 = vlaneseq
    %v609 = vshrl.u32 %v608, 7
    %v610 = vsub.s32 %v237, %v609
    %v611 = vrot.slane %v489, %v610
    %v612 = vlaneseq
    %v613 = vshrl.u32 %v612, 7
    %v614 = vsub.s32 %v237, %v613
    %v615 = vrot.slane %v494, %v614
    %v616 = vlaneseq
    %v617 = vshrl.u32 %v616, 7
    %v618 = vsub.s32 %v237, %v617
    %v619 = vrot.slane %v499, %v618
    %v620 = vlaneseq
    %v621 = vshrl.u32 %v620, 7
    %v622 = vsub.s32 %v237, %v621
    %v623 = vrot.slane %v504, %v622
    %v624 = vlaneseq
    %v625 = vshrl.u32 %v624, 7
    %v626 = vsub.s32 %v237, %v625
    %v627 = vrot.slane %v509, %v626
    %v628 = vlaneseq
    %v629 = vshrl.u32 %v628, 7
    %v630 = vsub.s32 %v237, %v629
    %v631 = vrot.slane %v514, %v630
    %v632 = vlaneseq
    %v633 = vshrl.u32 %v632, 7
    %v634 = vsub.s32 %v237, %v633
    %v635 = vrot.slane %v519, %v634
    %v636 = vlaneseq
    %v637 = vshrl.u32 %v636, 7
    %v638 = vsub.s32 %v237, %v637
    %v639 = vrot.slane %v524, %v638
    %v640 = vsel %vm270, %v615, %v611
    %v641 = vsel %vm272, %v619, %v640
    %v642 = vsel %vm274, %v623, %v641
    %v643 = vsel %vm276, %v627, %v642
    %v644 = vsel %vm278, %v631, %v643
    %v645 = vsel %vm280, %v635, %v644
    %v646 = vsel %vm282, %v639, %v645
    %648 = vst.msk [vmem:[#allocation5] sm:$0xff] %vm285, %v646
    // Predicated region
    $region18: #{tpu_custom_call.1} parent=1 // pred_check
      _
    $region19: #{tpu_custom_call.1} parent=1 // pred_check_branch
      %650 = sbr.rel (0) target = $region21
    $region20: #{tpu_custom_call.1} parent=1 // pred_region
      %s652 = ssub.s32 128, 128
      %653 = vsyncadd [#allocation4], %s652
      %s655 = sshll.u32 [#allocation3], 4
      %s656 = int_to_ptr.vmem [resolvable:$true] %s655
      %658 = dma.vmem_to_hbm [thread:$0]  %s656, 128, %s4, [#allocation4]
    $region21: #{tpu_custom_call.1} parent=1 // pred_fallthru
      _
    // Predicated region
    $region22: #{tpu_custom_call.1} parent=1 // pred_check
      _
    $region23: #{tpu_custom_call.1} parent=1 // pred_check_branch
      %660 = sbr.rel (0) target = $region25
    $region24: #{tpu_custom_call.1} parent=1 // pred_region
      %s662 = ssub.s32 128, 128
      %663 = vsyncadd [#allocation6], %s662
      %s665 = sshll.u32 [#allocation5], 4
      %s666 = int_to_ptr.vmem [resolvable:$true] %s665
      %668 = dma.vmem_to_hbm [thread:$0]  %s666, 128, %s5, [#allocation6]
    $region25: #{tpu_custom_call.1} parent=1 // pred_fallthru
      _
    // Predicated region
    $region26: #{tpu_custom_call.1} parent=1 // pred_check
      _
    $region27: #{tpu_custom_call.1} parent=1 // pred_check_branch
      %670 = sbr.rel (0) target = $region29
    $region28: #{tpu_custom_call.1} parent=1 // pred_region
      %671 = dma.done [#allocation4], 128
    $region29: #{tpu_custom_call.1} parent=1 // pred_fallthru
      _
    // Predicated region
    $region30: #{tpu_custom_call.1} parent=1 // pred_check
      _
    $region31: #{tpu_custom_call.1} parent=1 // pred_check_branch
      %673 = sbr.rel (0) target = $region33
    $region32: #{tpu_custom_call.1} parent=1 // pred_region
      %674 = dma.done [#allocation6], 128
    $region33: #{tpu_custom_call.1} parent=1 // pred_fallthru
      _
    %675 = vsyncpa [#allocation4], 1
    %676 = vsyncpa [#allocation6], 1

</llo_original>
